<compile_context>
chip_gen: v5e
topology: v5e:2x2
jax: 0.10.0
libtpu: 0.0.40
codegen_flags: <defaults>
</compile_context>

<pallas_src>
import jax
import jax.numpy as jnp
from jax.experimental import pallas as pl
from jax.experimental.pallas import tpu as pltpu


def _round_up(x, m):
    return ((x + m - 1) // m) * m


def _pick_tile(dim, candidates=(1024, 512, 256, 128), max_pad_frac=0.25):
    """Pick (tile, padded_dim) for a lane-aligned (128-multiple) axis.

    Prefers the largest candidate whose zero-padding overhead stays under
    max_pad_frac (big DMA grain, few re-reads). A dim that fits in one tile is
    covered by a single full-extent block.
    """
    dim128 = _round_up(dim, 128)
    if dim128 <= candidates[0]:
        return dim128, dim128
    best = None
    for c in candidates:
        padded = _round_up(dim, c)
        if (padded - dim) / dim <= max_pad_frac:
            return c, padded
        if best is None or padded < best[1]:
            best = (c, padded)
    return best


def _vmem_cap_bytes():
    # Per-generation cap: request at most ~3/4 of physical VMEM so the
    # double-buffered pipeline is never evicted (v5e/v6e: 128MiB -> 96MiB cap,
    # v7x: 64MiB -> 48MiB cap). Falls back to a safe 48MiB if the query fails.
    cap = 64 << 20
    try:
        info = pltpu.get_tpu_info()
        cap = int(getattr(info, "vmem_capacity_bytes", cap))
    except Exception:
        pass
    return min((cap * 3) // 4, 96 << 20)


# ------------------------------- kernels -------------------------------

def _fc_relu_fused_kernel(x_ref, w_ref, b_ref, o_ref):
    # Single reduction step (full K resident): no accumulator scratch, no
    # pl.when gating -- one MXU pass + fused f32 bias/ReLU epilogue per tile.
    acc = jnp.dot(x_ref[...], w_ref[...], preferred_element_type=jnp.float32)
    o_ref[...] = jnp.maximum(acc + b_ref[...], 0.0).astype(o_ref.dtype)


def _fc_relu_acc_kernel(x_ref, w_ref, b_ref, o_ref, acc_ref):
    # grid = (outer tile axis, inner tile axis, k); k innermost reduction.
    k = pl.program_id(2)

    @pl.when(k == 0)
    def _():
        acc_ref[...] = jnp.zeros_like(acc_ref)

    acc_ref[...] += jnp.dot(x_ref[...], w_ref[...],
                            preferred_element_type=jnp.float32)

    @pl.when(k == pl.num_programs(2) - 1)
    def _():
        # f32 epilogue (bias broadcast + ReLU), cast only on the final store.
        o_ref[...] = jnp.maximum(acc_ref[...] + b_ref[...], 0.0).astype(o_ref.dtype)


# ------------------------------- wrapper -------------------------------

def make_fc_relu(w, b, *, compute_dtype=jnp.bfloat16):
    """Build y = relu(x @ w + b) with parameters prepared once (hoisted).

    w: (in_features, out_features)   b: (out_features,)
    compute_dtype: MXU input dtype. bf16 default (native on v5e/v6e/v7x MXU,
    halves x/w HBM bytes); accumulation and epilogue are always f32.
    """
    K, N = w.shape
    assert b.shape == (N,)

    tn0, Np = _pick_tile(N)
    tk, Kp = _pick_tile(K)
    multi_k = (Kp // tk) > 1
    in_bytes = jnp.dtype(compute_dtype).itemsize
    sub = max(8, 32 // in_bytes)            # sublane packing multiple for tm

    # Hoisted parameter prep: pad + cast once, never per call.
    wp = w if (Kp, Np) == (K, N) else jnp.pad(w, ((0, Kp - K), (0, Np - N)))
    wp = wp.astype(compute_dtype)
    bp = b if Np == N else jnp.pad(b, (0, Np - N))
    bp = bp.astype(jnp.float32).reshape(1, Np)

    def fwd(x):
        M = x.shape[0]
        assert x.shape == (M, K)
        out_dtype = x.dtype

        # ---- M tile: multiple of the sublane pack, up to 512 (mult. of 256) ----
        if M <= 512:
            tm = _round_up(M, sub)
            Mp = tm
        else:
            tm = 512
            Mp = _round_up(M, tm)

        tn = tn0
        # Megacore (v7x has 2 TensorCores): expose >= 2 parallel output tiles.
        if (Mp // tm) * (Np // tn) < 2 and tn == Np and Np % 256 == 0:
            tn = Np // 2

        # ---- grid order: re-stream the operand whose re-read costs fewer bytes ----
        x_restream = (Np // tn - 1) * Mp * Kp
        w_restream = (Mp // tm - 1) * Kp * Np
        n_outer = x_restream <= w_restream

        # ---- VMEM budget: double-buffered inputs/outputs (+ f32 accumulator) ----
        out_bytes = jnp.dtype(out_dtype).itemsize
        ws = (2 * (tm * tk + tk * tn) * in_bytes + 2 * tn * 4
              + 2 * tm * tn * out_bytes + (tm * tn * 4 if multi_k else 0))
        vmem_limit = int(min(max(2 * ws, 32 << 20), _vmem_cap_bytes()))

        # ---- per-call activation pad/cast (zeros are neutral for dot/bias/relu) ----
        xp = x if (Mp, Kp) == (M, K) else jnp.pad(x, ((0, Mp - M), (0, Kp - K)))
        xp = xp.astype(compute_dtype)

        if multi_k:
            if n_outer:
                grid = (Np // tn, Mp // tm, Kp // tk)
                x_map = lambda n, m, k: (m, k)
                w_map = lambda n, m, k: (k, n)
                b_map = lambda n, m, k: (0, n)
                o_map = lambda n, m, k: (m, n)
            else:
                grid = (Mp // tm, Np // tn, Kp // tk)
                x_map = lambda m, n, k: (m, k)
                w_map = lambda m, n, k: (k, n)
                b_map = lambda m, n, k: (0, n)
                o_map = lambda m, n, k: (m, n)
            kernel = _fc_relu_acc_kernel
            scratch = [pltpu.VMEM((tm, tn), jnp.float32)]
            semantics = ("parallel", "parallel", "arbitrary")
        else:
            if n_outer:
                grid = (Np // tn, Mp // tm)
                x_map = lambda n, m: (m, 0)
                w_map = lambda n, m: (0, n)
                b_map = lambda n, m: (0, n)
                o_map = lambda n, m: (m, n)
            else:
                grid = (Mp // tm, Np // tn)
                x_map = lambda m, n: (m, 0)
                w_map = lambda m, n: (0, n)
                b_map = lambda m, n: (0, n)
                o_map = lambda m, n: (m, n)
            kernel = _fc_relu_fused_kernel
            scratch = []
            semantics = ("parallel", "parallel")

        out = pl.pallas_call(
            kernel,
            out_shape=jax.ShapeDtypeStruct((Mp, Np), out_dtype),
            grid_spec=pltpu.PrefetchScalarGridSpec(
                num_scalar_prefetch=0,
                grid=grid,
                in_specs=[
                    # TODO(synk): on v5e, if profiling shows exposed DMA, add
                    # pipeline_mode=pl.Buffered(3) to the streamed operand.
                    pl.BlockSpec((tm, tk), x_map),
                    pl.BlockSpec((tk, tn), w_map),
                    pl.BlockSpec((1, tn), b_map),
                ],
                out_specs=pl.BlockSpec((tm, tn), o_map),
                scratch_shapes=scratch,
            ),
            compiler_params=pltpu.CompilerParams(
                dimension_semantics=semantics,
                vmem_limit_bytes=vmem_limit,
            ),
        )(xp, wp, bp)

        if (Mp, Np) != (M, N):
            out = out[:M, :N]
        return out

    return jax.jit(fwd)


def reference_fc_relu(x, w, b):
    return jnp.maximum(x @ w + b[None, :], 0.0)


if __name__ == "__main__":
    key = jax.random.PRNGKey(0)
    kx, kw, kb = jax.random.split(key, 3)

    batch, in_features, out_features = 8, 32, 64

    x = jax.random.normal(kx, (batch, in_features), dtype=jnp.float32)
    # Deterministic parameter init (mimics nn.Linear uniform(-1/sqrt(K), 1/sqrt(K)))
    bound = 1.0 / jnp.sqrt(jnp.float32(in_features))
    w = jax.random.uniform(kw, (in_features, out_features),
                           minval=-bound, maxval=bound, dtype=jnp.float32)
    b = jax.random.uniform(kb, (out_features,),
                           minval=-bound, maxval=bound, dtype=jnp.float32)

    ref = reference_fc_relu(x, w, b)

    # Strict check on the f32 compute path.
    fc_f32 = make_fc_relu(w, b, compute_dtype=jnp.float32)
    out_f32 = jax.block_until_ready(fc_f32(x))
    assert out_f32.shape == (batch, out_features)
    assert jnp.allclose(out_f32, ref, atol=1e-5, rtol=1e-5)

    # Default fast path: bf16 MXU inputs, f32 accumulation (looser tolerance).
    fc = make_fc_relu(w, b)
    out = jax.block_until_ready(fc(x))
    assert out.shape == (batch, out_features)
    assert jnp.allclose(out, ref, atol=3e-2, rtol=3e-2)

    print("KERNEL_OK")
</pallas_src>

<mosaic_0001>
module attributes {stable_mosaic.version = 11 : i64} {
  func.func @_fc_relu_fused_kernel(%arg0: i32, %arg1: i32, %arg2: memref<8x128xf32, #tpu.memory_space<vmem>>, %arg3: memref<128x128xf32, #tpu.memory_space<vmem>>, %arg4: memref<1x128xf32, #tpu.memory_space<vmem>>, %arg5: memref<8x128xf32, #tpu.memory_space<vmem>>) attributes {dimension_semantics = [#tpu.dimension_semantics<parallel>, #tpu.dimension_semantics<parallel>], iteration_bounds = array<i64: 1, 1>, scalar_prefetch = 0 : i64, scratch_operands = 0 : i64, tpu.core_type = #tpu.core_type<tc>, window_params = [{transform_indices = @transform_0, window_bounds = array<i64: 8, 128>}, {transform_indices = @transform_1, window_bounds = array<i64: 128, 128>}, {transform_indices = @transform_2, window_bounds = array<i64: 1, 128>}, {transform_indices = @transform_3, window_bounds = array<i64: 8, 128>}]} {
    %c0 = arith.constant 0 : index
    %c0_0 = arith.constant 0 : index
    %0 = vector.load %arg2[%c0, %c0_0] : memref<8x128xf32, #tpu.memory_space<vmem>>, vector<8x128xf32>
    %c0_1 = arith.constant 0 : index
    %c0_2 = arith.constant 0 : index
    %1 = vector.load %arg3[%c0_1, %c0_2] : memref<128x128xf32, #tpu.memory_space<vmem>>, vector<128x128xf32>
    %cst = arith.constant dense<0.000000e+00> : vector<8x128xf32>
    %2 = tpu.matmul %0, %1, %cst {dimension_numbers = #tpu.dot_dimension_numbers<[1], [0], [0], [1], [0, 0, 1, 1], [], []>} : vector<8x128xf32>, vector<128x128xf32>, vector<8x128xf32> -> vector<8x128xf32>
    %c0_3 = arith.constant 0 : index
    %c0_4 = arith.constant 0 : index
    %3 = vector.load %arg4[%c0_3, %c0_4] : memref<1x128xf32, #tpu.memory_space<vmem>>, vector<1x128xf32>
    %4 = vector.broadcast %3 : vector<1x128xf32> to vector<8x128xf32>
    %5 = arith.addf %2, %4 : vector<8x128xf32>
    %cst_5 = arith.constant 0.000000e+00 : f32
    %6 = vector.broadcast %cst_5 : f32 to vector<8x128xf32>
    %7 = arith.maximumf %5, %6 : vector<8x128xf32>
    %c0_6 = arith.constant 0 : index
    %c0_7 = arith.constant 0 : index
    %8 = vector.load %arg5[%c0_6, %c0_7] : memref<8x128xf32, #tpu.memory_space<vmem>>, vector<8x128xf32>
    tpu.vector_store %arg5[%c0_6, %c0_7], %7 {strides = array<i32>} : memref<8x128xf32, #tpu.memory_space<vmem>>, vector<8x128xf32>,
    return
  }
  func.func @transform_0(%arg0: i32, %arg1: i32) -> (i32, i32) {
    %c0_i32 = arith.constant 0 : i32
    %c0_i32_0 = arith.constant 0 : i32
    return %arg1, %c0_i32 : i32, i32
  }
  func.func @transform_1(%arg0: i32, %arg1: i32) -> (i32, i32) {
    %c0_i32 = arith.constant 0 : i32
    %c0_i32_0 = arith.constant 0 : i32
    return %c0_i32, %arg0 : i32, i32
  }
  func.func @transform_2(%arg0: i32, %arg1: i32) -> (i32, i32) {
    %c0_i32 = arith.constant 0 : i32
    %c0_i32_0 = arith.constant 0 : i32
    return %c0_i32, %arg0 : i32, i32
  }
  func.func @transform_3(%arg0: i32, %arg1: i32) -> (i32, i32) {
    %c0_i32 = arith.constant 0 : i32
    return %arg1, %arg0 : i32, i32
  }
}

</mosaic_0001>

<llo_original>
// kernel: fwd.1
$region0: #{fwd.1}
  #allocation0 [shape = 'u32[]', space=smem, size = 0x4, offset = 0x4, fixed_abs, tag = 'smem constant byte address 0x4 - core index']
  #allocation1 [shape = 'u32[72,128]{1,0:T(1,128)}', space=vmem, size = 0x9000, scoped, tag = 'internal scratch']
  %s0 = inlined_call_operand.vmem [shape: f32[8,128], index: 0, kind: input, shape index: {}]
  %s1 = inlined_call_operand.hbm [shape: f32[128,128], index: 1, kind: input, shape index: {}]
  %s2 = inlined_call_operand.vmem [shape: f32[1,128], index: 2, kind: input, shape index: {}]
  %s3 = inlined_call_operand.hbm [shape: f32[8,128], index: 3, kind: output, shape index: {}]
  %s4 = sld [smem:[#allocation0]]
  $region26: #{fwd.1} parent=0
    _
  %s6 = ssub.s32 1, %s4
  %s7 = scalar_select 0, %s6, %s4
  $region1: #{fwd.1} parent=0
    #allocation2 [shape = 'u8[65536]{0}', space=vmem, size = 0x10000, scoped, tag = 'input window, operand 1, single buffered']
    #allocation3 [shape = 's32[1]{0}', space=sflag, size = 0x4, scoped, tag = 'scoped memory for fwd.1']
    #allocation4 [shape = 's32[1]{0}', space=sflag, size = 0x4, scoped, tag = 'scoped memory for fwd.1']
    #allocation5 [shape = 'u8[4096]{0}', space=vmem, size = 0x1000, scoped, tag = 'output window, operand 0, single buffered']
    %8 = vsyncpa [#allocation3], 0
    %9 = vsyncpa [#allocation4], 0
    // Predicated region
    $region2: #{fwd.1} parent=1 // pred_check
      _
    $region3: #{fwd.1} parent=1 // pred_check_branch
      %11 = sbr.rel (0) target = $region5
    $region4: #{fwd.1} parent=1 // pred_region
      _
    $region5: #{fwd.1} parent=1 // pred_fallthru
      _
    // Predicated region
    $region6: #{fwd.1} parent=1 // pred_check
      _
    $region7: #{fwd.1} parent=1 // pred_check_branch
      %13 = sbr.rel (0) target = $region9
    $region8: #{fwd.1} parent=1 // pred_region
      %15 = vsyncadd [#allocation3], 0
      %s16 = sshll.u32 %s1, 4
      %s17 = int_to_ptr.hbm [resolvable:$true] %s16
      %s18 = sshll.u32 [#allocation2], 4
      %s19 = int_to_ptr.vmem [resolvable:$true] %s18
      %24 = dma.hbm_to_vmem [thread:$0]  %s17, 2048, %s19, [#allocation3], 128, 128, 8
    $region9: #{fwd.1} parent=1 // pred_fallthru
      _
    // Predicated region
    $region10: #{fwd.1} parent=1 // pred_check
      _
    $region11: #{fwd.1} parent=1 // pred_check_branch
      %26 = sbr.rel (0) target = $region13
    $region12: #{fwd.1} parent=1 // pred_region
      _
    $region13: #{fwd.1} parent=1 // pred_fallthru
      _
    // Predicated region
    $region14: #{fwd.1} parent=1 // pred_check
      _
    $region15: #{fwd.1} parent=1 // pred_check_branch
      %28 = sbr.rel (0) target = $region17
    $region16: #{fwd.1} parent=1 // pred_region
      %30 = dma.done [#allocation3], 2048
    $region17: #{fwd.1} parent=1 // pred_fallthru
      _
    %v31 = vld [vmem:[%s0] sm:$0xff]
    %v32 = vld [vmem:[#allocation2] sm:$0xff]
    %v33 = vld [vmem:[#allocation2 + $0x8] sm:$0xff]
    %v34 = vld [vmem:[#allocation2 + $0x10] sm:$0xff]
    %v35 = vld [vmem:[#allocation2 + $0x18] sm:$0xff]
    %v36 = vld [vmem:[#allocation2 + $0x20] sm:$0xff]
    %v37 = vld [vmem:[#allocation2 + $0x28] sm:$0xff]
    %v38 = vld [vmem:[#allocation2 + $0x30] sm:$0xff]
    %v39 = vld [vmem:[#allocation2 + $0x38] sm:$0xff]
    %v40 = vld [vmem:[#allocation2 + $0x40] sm:$0xff]
    %v41 = vld [vmem:[#allocation2 + $0x48] sm:$0xff]
    %v42 = vld [vmem:[#allocation2 + $0x50] sm:$0xff]
    %v43 = vld [vmem:[#allocation2 + $0x58] sm:$0xff]
    %v44 = vld [vmem:[#allocation2 + $0x60] sm:$0xff]
    %v45 = vld [vmem:[#allocation2 + $0x68] sm:$0xff]
    %v46 = vld [vmem:[#allocation2 + $0x70] sm:$0xff]
    %v47 = vld [vmem:[#allocation2 + $0x78] sm:$0xff]
    %v48 = vld [vmem:[%s2] sm:$0x1]
    %v50 = vperm.slane %v48, 0
    %52 = vmatpush.msra.mxu0 %v47
    %53 = vmatpush.msra.mxu0 %v46
    %54 = vmatpush.msra.mxu0 %v45
    %55 = vmatpush.msra.mxu0 %v44
    %56 = vmatpush.msra.mxu0 %v43
    %57 = vmatpush.msra.mxu0 %v42
    %58 = vmatpush.msra.mxu0 %v41
    %59 = vmatpush.msra.mxu0 %v40
    %60 = vmatpush.msra.mxu0 %v39
    %61 = vmatpush.msra.mxu0 %v38
    %62 = vmatpush.msra.mxu0 %v37
    %63 = vmatpush.msra.mxu0 %v36
    %64 = vmatpush.msra.mxu0 %v35
    %65 = vmatpush.msra.mxu0 %v34
    %66 = vmatpush.msra.mxu0 %v33
    %67 = vmatpush.msra.mxu0 %v32
    %68 = vmatmul.f32.gmra.mxu0 %v31
    %v69 = vpop.f32.mrf.mxu0
    %v70 = vadd.f32 %v50, %v69
    %71 = vdwg.mxu0
    %v72 = vmax.f32 %v70, 0.0
    %73 = vst [vmem:[#allocation5] sm:$0xff] %v72
    // Predicated region
    $region18: #{fwd.1} parent=1 // pred_check
      _
    $region19: #{fwd.1} parent=1 // pred_check_branch
      %75 = sbr.rel (0) target = $region21
    $region20: #{fwd.1} parent=1 // pred_region
      %77 = vsyncadd [#allocation4], 0
      %s79 = sshll.u32 [#allocation5], 4
      %s80 = int_to_ptr.vmem [resolvable:$true] %s79
      %s81 = sshll.u32 %s3, 4
      %s82 = int_to_ptr.hbm [resolvable:$true] %s81
      %84 = dma.vmem_to_hbm [thread:$0]  %s80, 128, %s82, [#allocation4]
    $region21: #{fwd.1} parent=1 // pred_fallthru
      _
    // Predicated region
    $region22: #{fwd.1} parent=1 // pred_check
      _
    $region23: #{fwd.1} parent=1 // pred_check_branch
      %86 = sbr.rel (0) target = $region25
    $region24: #{fwd.1} parent=1 // pred_region
      %88 = dma.done [#allocation4], 128
    $region25: #{fwd.1} parent=1 // pred_fallthru
      _
    %89 = vsyncpa [#allocation3], 1
    %90 = vsyncpa [#allocation4], 1

</llo_original>
